<compile_context>
chip_gen: v7x
topology: tpu7x:2x2x1
jax: 0.10.0
libtpu: 0.0.40
codegen_flags: <defaults>
</compile_context>

<pallas_src>
import functools

import jax
import jax.numpy as jnp
import numpy as np
from jax.experimental import pallas as pl
from jax.experimental.pallas import tpu as pltpu


# ----------------------------------------------------------------------------
# Fused kernel: all expert layers + gate softmax + gate mixing.
#   refs = (x, [w, scale, shift] * num_layers, gates, mixed_out, gates_sm_out)
#   x      : (B, Din)
#   w_l    : (E*H_{l-1} or Din, E*H_l)   packed (concat / block-diagonal)
#   scale_l: (1, E*H_l)                  folded BN scale
#   shift_l: (1, E*H_l)                  folded linear-bias + BN shift
#   gates  : (T, E)
#   mixed  : (T, B, H_last)
#   gsm    : (T, E)                      softmaxed gates (the returned gate_list)
# ----------------------------------------------------------------------------
def mmoe_fused_kernel(*refs, num_layers):
    n_in = 2 + 3 * num_layers
    x_ref = refs[0]
    gates_ref = refs[n_in - 1]
    out_ref = refs[n_in]
    gsm_ref = refs[n_in + 1]

    # Expert MLP: one lane-dense matmul per layer (experts fused along lanes).
    h = x_ref[...]                                            # (B, Din)
    for l in range(num_layers):
        w_ref, s_ref, b_ref = refs[1 + 3 * l: 4 + 3 * l]
        h = jnp.dot(h, w_ref[...], preferred_element_type=jnp.float32)
        h = jnp.maximum(h * s_ref[...] + b_ref[...], 0.0)     # bias+BN(eval)+ReLU

    T, E = gates_ref.shape
    B = out_ref.shape[1]
    H = out_ref.shape[2]

    # Gate softmax over experts (tiny (T,E) array, done in-kernel).
    g = gates_ref[...]
    g = g - jnp.max(g, axis=-1, keepdims=True)
    eg = jnp.exp(g)
    gsm = eg / jnp.sum(eg, axis=-1, keepdims=True)            # (T, E)
    gsm_ref[...] = gsm

    # Gate mixing: out[t] = sum_e gsm[t, e] * h[:, e*H:(e+1)*H]   (unrolled)
    for t in range(T):
        acc = jnp.zeros((B, H), jnp.float32)
        for e in range(E):
            acc = acc + gsm[t:t + 1, e:e + 1] * h[:, e * H:(e + 1) * H]
        out_ref[t] = acc


# ----------------------------------------------------------------------------
# Wrapper (glue only): pack per-expert weights into lane-dense / block-diagonal
# form and launch the single fused kernel.
# ----------------------------------------------------------------------------
def _block_diag(blocks):
    e = len(blocks)
    din, h = blocks[0].shape
    out = jnp.zeros((e * din, e * h), blocks[0].dtype)
    for i, blk in enumerate(blocks):
        out = out.at[i * din:(i + 1) * din, i * h:(i + 1) * h].set(blk)
    return out


def mmoe_forward(x, layer_weights, layer_scales, layer_shifts, gates):
    """x: (B, input_dim); returns ([ (B,H) ] * num_tasks, softmaxed gates (T,E))."""
    num_layers = len(layer_weights)
    B = x.shape[0]
    T, E = gates.shape
    H_last = layer_weights[-1].shape[2]

    packed = []
    for li, (w, sc, sh) in enumerate(zip(layer_weights, layer_scales, layer_shifts)):
        E_, din, h = w.shape
        if li == 0:
            # shared input -> concatenate expert weights along output (lane) dim
            wp = jnp.transpose(w, (1, 0, 2)).reshape(din, E_ * h)
        else:
            # per-expert input blocks -> block-diagonal weight
            wp = _block_diag([w[e] for e in range(E_)])
        sp = jnp.transpose(sc, (1, 0, 2)).reshape(1, E_ * h)
        bp = jnp.transpose(sh, (1, 0, 2)).reshape(1, E_ * h)
        packed += [wp, sp, bp]

    n_in = 2 + 3 * num_layers
    kernel = functools.partial(mmoe_fused_kernel, num_layers=num_layers)
    mixed, gsm = pl.pallas_call(
        kernel,
        out_shape=(jax.ShapeDtypeStruct((T, B, H_last), jnp.float32),
                   jax.ShapeDtypeStruct((T, E), jnp.float32)),
        in_specs=[pl.BlockSpec(memory_space=pltpu.MemorySpace.VMEM)] * n_in,
        out_specs=(pl.BlockSpec(memory_space=pltpu.MemorySpace.VMEM),
                   pl.BlockSpec(memory_space=pltpu.MemorySpace.VMEM)),
    )(x, *packed, gates)

    outputs = [mixed[t] for t in range(T)]
    return outputs, gsm


# ----------------------------------------------------------------------------
# Pure-JAX reference for validation (mirrors the PyTorch per-expert loop).
# ----------------------------------------------------------------------------
def mmoe_reference(x, layer_weights, layer_scales, layer_shifts, gates):
    E = layer_weights[0].shape[0]
    acts = jnp.broadcast_to(x[None], (E,) + x.shape)
    for w, sc, sh in zip(layer_weights, layer_scales, layer_shifts):
        acts = jnp.maximum(jnp.einsum("ebd,edh->ebh", acts, w) * sc + sh, 0.0)
    final_expert = jnp.transpose(acts, (1, 2, 0))     # (B, H, E) == torch.stack(.., 2)
    gates_sm = jax.nn.softmax(gates, axis=-1)
    mixed = jnp.einsum("bhe,te->tbh", final_expert, gates_sm)
    return [mixed[t] for t in range(gates.shape[0])], gates_sm


if __name__ == "__main__":
    # Small shapes consistent with the module.
    B = 8                       # batch
    input_dim = 32
    dnn_hidden_units = (32, 16)
    num_experts = 4             # E*H1 = 128 (lane-dense), E*H2 = 64
    num_tasks = 2
    bn_eps = 1e-5

    key = jax.random.PRNGKey(0)
    k_x, k_g, *k_layers = jax.random.split(key, 2 + 2 * len(dnn_hidden_units))

    x = jax.random.normal(k_x, (B, input_dim), dtype=jnp.float32)

    # Deterministic parameter init (shapes per MMOELayer.__init__ / DNN):
    # per expert e, per layer l: W_l[e]: (Din_l, Dout_l), bias_l[e]: (Dout_l,)
    # BN(eval) with default stats (mean=0, var=1, gamma=1, beta=0) folded in.
    layer_dims = (input_dim,) + tuple(dnn_hidden_units)
    layer_weights, layer_scales, layer_shifts = [], [], []
    for li in range(len(dnn_hidden_units)):
        din, dout = layer_dims[li], layer_dims[li + 1]
        kw, kb = k_layers[2 * li], k_layers[2 * li + 1]
        w = 0.05 * jax.random.normal(kw, (num_experts, din, dout), dtype=jnp.float32)
        b = 0.05 * jax.random.normal(kb, (num_experts, 1, dout), dtype=jnp.float32)
        bn_scale = 1.0 / np.sqrt(1.0 + bn_eps)        # gamma / sqrt(var + eps)
        scale = jnp.full((num_experts, 1, dout), bn_scale, dtype=jnp.float32)
        shift = b * bn_scale                          # (bias - mean) * scale + beta
        layer_weights.append(w)
        layer_scales.append(scale)
        layer_shifts.append(shift)

    # gate_i = torch.rand(num_experts) for each task  -> stacked (T, E)
    gates = jax.random.uniform(k_g, (num_tasks, num_experts), dtype=jnp.float32)

    outputs, gate_list = mmoe_forward(x, layer_weights, layer_scales,
                                      layer_shifts, gates)
    outputs = [jax.block_until_ready(o) for o in outputs]
    gate_list = jax.block_until_ready(gate_list)

    ref_outputs, ref_gates = mmoe_reference(x, layer_weights, layer_scales,
                                            layer_shifts, gates)
    for o, r in zip(outputs, ref_outputs):
        np.testing.assert_allclose(np.asarray(o), np.asarray(r),
                                   rtol=1e-5, atol=1e-5)
    np.testing.assert_allclose(np.asarray(gate_list), np.asarray(ref_gates),
                               rtol=1e-5, atol=1e-6)

    print("KERNEL_OK")
</pallas_src>

<mosaic_0001>
module attributes {stable_mosaic.version = 11 : i64} {
  func.func @mmoe_fused_kernel(%arg0: memref<8x32xf32, #tpu.memory_space<vmem>>, %arg1: memref<32x128xf32, #tpu.memory_space<vmem>>, %arg2: memref<1x128xf32, #tpu.memory_space<vmem>>, %arg3: memref<1x128xf32, #tpu.memory_space<vmem>>, %arg4: memref<128x64xf32, #tpu.memory_space<vmem>>, %arg5: memref<1x64xf32, #tpu.memory_space<vmem>>, %arg6: memref<1x64xf32, #tpu.memory_space<vmem>>, %arg7: memref<2x4xf32, #tpu.memory_space<vmem>>, %arg8: memref<2x8x16xf32, #tpu.memory_space<vmem>>, %arg9: memref<2x4xf32, #tpu.memory_space<vmem>>) attributes {dimension_semantics = [], scalar_prefetch = 0 : i64, scratch_operands = 0 : i64, tpu.core_type = #tpu.core_type<tc>} {
    %c0 = arith.constant 0 : index
    %c0_0 = arith.constant 0 : index
    %0 = vector.load %arg0[%c0, %c0_0] : memref<8x32xf32, #tpu.memory_space<vmem>>, vector<8x32xf32>
    %c0_1 = arith.constant 0 : index
    %c0_2 = arith.constant 0 : index
    %1 = vector.load %arg1[%c0_1, %c0_2] : memref<32x128xf32, #tpu.memory_space<vmem>>, vector<32x128xf32>
    %cst = arith.constant dense<0.000000e+00> : vector<8x128xf32>
    %2 = tpu.matmul %0, %1, %cst {dimension_numbers = #tpu.dot_dimension_numbers<[1], [0], [0], [1], [0, 0, 1, 1], [], []>} : vector<8x32xf32>, vector<32x128xf32>, vector<8x128xf32> -> vector<8x128xf32>
    %c0_3 = arith.constant 0 : index
    %c0_4 = arith.constant 0 : index
    %3 = vector.load %arg2[%c0_3, %c0_4] : memref<1x128xf32, #tpu.memory_space<vmem>>, vector<1x128xf32>
    %4 = vector.broadcast %3 : vector<1x128xf32> to vector<8x128xf32>
    %5 = arith.mulf %2, %4 : vector<8x128xf32>
    %c0_5 = arith.constant 0 : index
    %c0_6 = arith.constant 0 : index
    %6 = vector.load %arg3[%c0_5, %c0_6] : memref<1x128xf32, #tpu.memory_space<vmem>>, vector<1x128xf32>
    %7 = vector.broadcast %6 : vector<1x128xf32> to vector<8x128xf32>
    %8 = arith.addf %5, %7 : vector<8x128xf32>
    %cst_7 = arith.constant 0.000000e+00 : f32
    %9 = vector.broadcast %cst_7 : f32 to vector<8x128xf32>
    %10 = arith.maximumf %8, %9 : vector<8x128xf32>
    %c0_8 = arith.constant 0 : index
    %c0_9 = arith.constant 0 : index
    %11 = vector.load %arg4[%c0_8, %c0_9] : memref<128x64xf32, #tpu.memory_space<vmem>>, vector<128x64xf32>
    %cst_10 = arith.constant dense<0.000000e+00> : vector<8x64xf32>
    %12 = tpu.matmul %10, %11, %cst_10 {dimension_numbers = #tpu.dot_dimension_numbers<[1], [0], [0], [1], [0, 0, 1, 1], [], []>} : vector<8x128xf32>, vector<128x64xf32>, vector<8x64xf32> -> vector<8x64xf32>
    %c0_11 = arith.constant 0 : index
    %c0_12 = arith.constant 0 : index
    %13 = vector.load %arg5[%c0_11, %c0_12] : memref<1x64xf32, #tpu.memory_space<vmem>>, vector<1x64xf32>
    %14 = vector.broadcast %13 : vector<1x64xf32> to vector<8x64xf32>
    %15 = arith.mulf %12, %14 : vector<8x64xf32>
    %c0_13 = arith.constant 0 : index
    %c0_14 = arith.constant 0 : index
    %16 = vector.load %arg6[%c0_13, %c0_14] : memref<1x64xf32, #tpu.memory_space<vmem>>, vector<1x64xf32>
    %17 = vector.broadcast %16 : vector<1x64xf32> to vector<8x64xf32>
    %18 = arith.addf %15, %17 : vector<8x64xf32>
    %cst_15 = arith.constant 0.000000e+00 : f32
    %19 = vector.broadcast %cst_15 : f32 to vector<8x64xf32>
    %20 = arith.maximumf %18, %19 : vector<8x64xf32>
    %c0_16 = arith.constant 0 : index
    %c0_17 = arith.constant 0 : index
    %21 = vector.load %arg7[%c0_16, %c0_17] : memref<2x4xf32, #tpu.memory_space<vmem>>, vector<2x4xf32>
    %cst_18 = arith.constant dense<0xFF800000> : vector<2xf32>
    %22 = vector.multi_reduction <maximumf>, %21, %cst_18 [1] : vector<2x4xf32> to vector<2xf32>
    %23 = vector.shape_cast %22 : vector<2xf32> to vector<2x1xf32>
    %24 = vector.broadcast %23 : vector<2x1xf32> to vector<2x4xf32>
    %25 = arith.subf %21, %24 : vector<2x4xf32>
    %26 = math.exp %25 : vector<2x4xf32>
    %cst_19 = arith.constant dense<0.000000e+00> : vector<2xf32>
    %27 = vector.multi_reduction <add>, %26, %cst_19 [1] : vector<2x4xf32> to vector<2xf32>
    %28 = vector.shape_cast %27 : vector<2xf32> to vector<2x1xf32>
    %29 = vector.broadcast %28 : vector<2x1xf32> to vector<2x4xf32>
    %30 = arith.divf %26, %29 : vector<2x4xf32>
    %c0_20 = arith.constant 0 : index
    %c0_21 = arith.constant 0 : index
    %31 = vector.load %arg9[%c0_20, %c0_21] : memref<2x4xf32, #tpu.memory_space<vmem>>, vector<2x4xf32>
    tpu.vector_store %arg9[%c0_20, %c0_21], %30 {strides = array<i32>} : memref<2x4xf32, #tpu.memory_space<vmem>>, vector<2x4xf32>,
    %cst_22 = arith.constant 0.000000e+00 : f32
    %32 = vector.broadcast %cst_22 : f32 to vector<8x16xf32>
    %33 = vector.extract_strided_slice %30 {offsets = [0, 0], sizes = [1, 1], strides = [1, 1]} : vector<2x4xf32> to vector<1x1xf32>
    %34 = vector.extract_strided_slice %20 {offsets = [0, 0], sizes = [8, 16], strides = [1, 1]} : vector<8x64xf32> to vector<8x16xf32>
    %35 = vector.broadcast %33 : vector<1x1xf32> to vector<8x16xf32>
    %36 = arith.mulf %35, %34 : vector<8x16xf32>
    %37 = arith.addf %32, %36 : vector<8x16xf32>
    %38 = vector.extract_strided_slice %30 {offsets = [0, 1], sizes = [1, 1], strides = [1, 1]} : vector<2x4xf32> to vector<1x1xf32>
    %39 = vector.extract_strided_slice %20 {offsets = [0, 16], sizes = [8, 16], strides = [1, 1]} : vector<8x64xf32> to vector<8x16xf32>
    %40 = vector.broadcast %38 : vector<1x1xf32> to vector<8x16xf32>
    %41 = arith.mulf %40, %39 : vector<8x16xf32>
    %42 = arith.addf %37, %41 : vector<8x16xf32>
    %43 = vector.extract_strided_slice %30 {offsets = [0, 2], sizes = [1, 1], strides = [1, 1]} : vector<2x4xf32> to vector<1x1xf32>
    %44 = vector.extract_strided_slice %20 {offsets = [0, 32], sizes = [8, 16], strides = [1, 1]} : vector<8x64xf32> to vector<8x16xf32>
    %45 = vector.broadcast %43 : vector<1x1xf32> to vector<8x16xf32>
    %46 = arith.mulf %45, %44 : vector<8x16xf32>
    %47 = arith.addf %42, %46 : vector<8x16xf32>
    %48 = vector.extract_strided_slice %30 {offsets = [0, 3], sizes = [1, 1], strides = [1, 1]} : vector<2x4xf32> to vector<1x1xf32>
    %49 = vector.extract_strided_slice %20 {offsets = [0, 48], sizes = [8, 16], strides = [1, 1]} : vector<8x64xf32> to vector<8x16xf32>
    %50 = vector.broadcast %48 : vector<1x1xf32> to vector<8x16xf32>
    %51 = arith.mulf %50, %49 : vector<8x16xf32>
    %52 = arith.addf %47, %51 : vector<8x16xf32>
    %c0_23 = arith.constant 0 : index
    %c0_24 = arith.constant 0 : index
    %c0_25 = arith.constant 0 : index
    %53 = vector.load %arg8[%c0_23, %c0_24, %c0_25] : memref<2x8x16xf32, #tpu.memory_space<vmem>>, vector<1x8x16xf32>
    %54 = vector.shape_cast %53 : vector<1x8x16xf32> to vector<8x16xf32>
    %55 = vector.shape_cast %52 : vector<8x16xf32> to vector<1x8x16xf32>
    tpu.vector_store %arg8[%c0_23, %c0_24, %c0_25], %55 {strides = array<i32>} : memref<2x8x16xf32, #tpu.memory_space<vmem>>, vector<1x8x16xf32>,
    %cst_26 = arith.constant 0.000000e+00 : f32
    %56 = vector.broadcast %cst_26 : f32 to vector<8x16xf32>
    %57 = vector.extract_strided_slice %30 {offsets = [1, 0], sizes = [1, 1], strides = [1, 1]} : vector<2x4xf32> to vector<1x1xf32>
    %58 = vector.extract_strided_slice %20 {offsets = [0, 0], sizes = [8, 16], strides = [1, 1]} : vector<8x64xf32> to vector<8x16xf32>
    %59 = vector.broadcast %57 : vector<1x1xf32> to vector<8x16xf32>
    %60 = arith.mulf %59, %58 : vector<8x16xf32>
    %61 = arith.addf %56, %60 : vector<8x16xf32>
    %62 = vector.extract_strided_slice %30 {offsets = [1, 1], sizes = [1, 1], strides = [1, 1]} : vector<2x4xf32> to vector<1x1xf32>
    %63 = vector.extract_strided_slice %20 {offsets = [0, 16], sizes = [8, 16], strides = [1, 1]} : vector<8x64xf32> to vector<8x16xf32>
    %64 = vector.broadcast %62 : vector<1x1xf32> to vector<8x16xf32>
    %65 = arith.mulf %64, %63 : vector<8x16xf32>
    %66 = arith.addf %61, %65 : vector<8x16xf32>
    %67 = vector.extract_strided_slice %30 {offsets = [1, 2], sizes = [1, 1], strides = [1, 1]} : vector<2x4xf32> to vector<1x1xf32>
    %68 = vector.extract_strided_slice %20 {offsets = [0, 32], sizes = [8, 16], strides = [1, 1]} : vector<8x64xf32> to vector<8x16xf32>
    %69 = vector.broadcast %67 : vector<1x1xf32> to vector<8x16xf32>
    %70 = arith.mulf %69, %68 : vector<8x16xf32>
    %71 = arith.addf %66, %70 : vector<8x16xf32>
    %72 = vector.extract_strided_slice %30 {offsets = [1, 3], sizes = [1, 1], strides = [1, 1]} : vector<2x4xf32> to vector<1x1xf32>
    %73 = vector.extract_strided_slice %20 {offsets = [0, 48], sizes = [8, 16], strides = [1, 1]} : vector<8x64xf32> to vector<8x16xf32>
    %74 = vector.broadcast %72 : vector<1x1xf32> to vector<8x16xf32>
    %75 = arith.mulf %74, %73 : vector<8x16xf32>
    %76 = arith.addf %71, %75 : vector<8x16xf32>
    %c1 = arith.constant 1 : index
    %c0_27 = arith.constant 0 : index
    %c0_28 = arith.constant 0 : index
    %77 = vector.load %arg8[%c1, %c0_27, %c0_28] : memref<2x8x16xf32, #tpu.memory_space<vmem>>, vector<1x8x16xf32>
    %78 = vector.shape_cast %77 : vector<1x8x16xf32> to vector<8x16xf32>
    %79 = vector.shape_cast %76 : vector<8x16xf32> to vector<1x8x16xf32>
    tpu.vector_store %arg8[%c1, %c0_27, %c0_28], %79 {strides = array<i32>} : memref<2x8x16xf32, #tpu.memory_space<vmem>>, vector<1x8x16xf32>,
    return
  }
}

</mosaic_0001>

<llo_original>
// kernel: tpu_custom_call.1
$region0: #{tpu_custom_call.1}
  #allocation0 [shape = 'u32[]', space=smem, size = 0x4, offset = 0x4, fixed_abs, tag = 'smem constant byte address 0x4 - core index']
  #allocation1 [shape = 'u32[144,128]{1,0:T(1,128)}', space=vmem, size = 0x12000, scoped, tag = 'internal scratch']
  %s0 = inlined_call_operand.vmem [shape: f32[8,32], index: 0, kind: input, shape index: {}]
  %s1 = inlined_call_operand.vmem [shape: f32[32,128], index: 1, kind: input, shape index: {}]
  %s2 = inlined_call_operand.vmem [shape: f32[1,128], index: 2, kind: input, shape index: {}]
  %s3 = inlined_call_operand.vmem [shape: f32[1,128], index: 3, kind: input, shape index: {}]
  %s4 = inlined_call_operand.vmem [shape: f32[128,64], index: 4, kind: input, shape index: {}]
  %s5 = inlined_call_operand.vmem [shape: f32[1,64], index: 5, kind: input, shape index: {}]
  %s6 = inlined_call_operand.vmem [shape: f32[1,64], index: 6, kind: input, shape index: {}]
  %s7 = inlined_call_operand.vmem [shape: f32[2,4], index: 7, kind: input, shape index: {}]
  %s8 = inlined_call_operand.hbm [shape: f32[2,8,16], index: 8, kind: output, shape index: {0}]
  %s9 = inlined_call_operand.hbm [shape: f32[2,4], index: 9, kind: output, shape index: {1}]
  %10 = xla_tuple %s8, %s9
  %s11 = sld [smem:[#allocation0]]
  $region50: #{tpu_custom_call.1} parent=0
    _
  %s13 = ssub.s32 1, %s11
  %s14 = scalar_select 0, %s13, %s11
  $region1: #{tpu_custom_call.1} parent=0
    #allocation2 [shape = 'u8[8192]{0}', space=vmem, size = 0x2000, scoped, tag = 'output window, operand 0, single buffered']
    #allocation3 [shape = 's32[1]{0}', space=sflag, size = 0x4, scoped, tag = 'scoped memory for tpu_custom_call.1']
    #allocation4 [shape = 'u8[1024]{0}', space=vmem, size = 0x400, scoped, tag = 'output window, operand 1, single buffered']
    #allocation5 [shape = 's32[1]{0}', space=sflag, size = 0x4, scoped, tag = 'scoped memory for tpu_custom_call.1']
    %15 = vsyncpa [#allocation3], 0
    %16 = vsyncpa [#allocation5], 0
    // Predicated region
    $region2: #{tpu_custom_call.1} parent=1 // pred_check
      _
    $region3: #{tpu_custom_call.1} parent=1 // pred_check_branch
      %18 = sbr.rel (0) target = $region5
    $region4: #{tpu_custom_call.1} parent=1 // pred_region
      _
    $region5: #{tpu_custom_call.1} parent=1 // pred_fallthru
      _
    // Predicated region
    $region6: #{tpu_custom_call.1} parent=1 // pred_check
      _
    $region7: #{tpu_custom_call.1} parent=1 // pred_check_branch
      %20 = sbr.rel (0) target = $region9
    $region8: #{tpu_custom_call.1} parent=1 // pred_region
      _
    $region9: #{tpu_custom_call.1} parent=1 // pred_fallthru
      _
    // Predicated region
    $region10: #{tpu_custom_call.1} parent=1 // pred_check
      _
    $region11: #{tpu_custom_call.1} parent=1 // pred_check_branch
      %22 = sbr.rel (0) target = $region13
    $region12: #{tpu_custom_call.1} parent=1 // pred_region
      _
    $region13: #{tpu_custom_call.1} parent=1 // pred_fallthru
      _
    // Predicated region
    $region14: #{tpu_custom_call.1} parent=1 // pred_check
      _
    $region15: #{tpu_custom_call.1} parent=1 // pred_check_branch
      %24 = sbr.rel (0) target = $region17
    $region16: #{tpu_custom_call.1} parent=1 // pred_region
      _
    $region17: #{tpu_custom_call.1} parent=1 // pred_fallthru
      _
    // Predicated region
    $region18: #{tpu_custom_call.1} parent=1 // pred_check
      _
    $region19: #{tpu_custom_call.1} parent=1 // pred_check_branch
      %26 = sbr.rel (0) target = $region21
    $region20: #{tpu_custom_call.1} parent=1 // pred_region
      _
    $region21: #{tpu_custom_call.1} parent=1 // pred_fallthru
      _
    // Predicated region
    $region22: #{tpu_custom_call.1} parent=1 // pred_check
      _
    $region23: #{tpu_custom_call.1} parent=1 // pred_check_branch
      %28 = sbr.rel (0) target = $region25
    $region24: #{tpu_custom_call.1} parent=1 // pred_region
      _
    $region25: #{tpu_custom_call.1} parent=1 // pred_fallthru
      _
    // Predicated region
    $region26: #{tpu_custom_call.1} parent=1 // pred_check
      _
    $region27: #{tpu_custom_call.1} parent=1 // pred_check_branch
      %30 = sbr.rel (0) target = $region29
    $region28: #{tpu_custom_call.1} parent=1 // pred_region
      _
    $region29: #{tpu_custom_call.1} parent=1 // pred_fallthru
      _
    // Predicated region
    $region30: #{tpu_custom_call.1} parent=1 // pred_check
      _
    $region31: #{tpu_custom_call.1} parent=1 // pred_check_branch
      %32 = sbr.rel (0) target = $region33
    $region32: #{tpu_custom_call.1} parent=1 // pred_region
      _
    $region33: #{tpu_custom_call.1} parent=1 // pred_fallthru
      _
    %v33 = vld [vmem:[%s0] sm:$0xff]
    %v34 = vld [vmem:[%s1] sm:$0xff]
    %v35 = vld [vmem:[%s1 + $0x8] sm:$0xff]
    %v36 = vld [vmem:[%s1 + $0x10] sm:$0xff]
    %v37 = vld [vmem:[%s1 + $0x18] sm:$0xff]
    %vm38 = vcmask 261120
    %v40 = vsel %vm38, %v33, 0
    %42 = vmatprep.subr.mxu0 0.0
    %43 = vmatpush1.msra.mxu0 %v34
    %44 = vmatprep.subr.mxu0 0.0
    %45 = vmatpush1.msra.mxu0 %v35
    %46 = vmatprep.subr.mxu0 0.0
    %47 = vmatpush1.msra.mxu0 %v36
    %48 = vmatprep.subr.mxu0 0.0
    %49 = vmatpush1.msra.mxu0 %v37
    %50 = vmatprep.subr.mxu0 0.0
    %51 = vmatpush1.msra.mxu0 0.0
    %52 = vmatprep.subr.mxu0 0.0
    %53 = vmatpush1.msra.mxu0 0.0
    %54 = vmatprep.subr.mxu0 0.0
    %55 = vmatpush1.msra.mxu0 0.0
    %56 = vmatprep.subr.mxu0 0.0
    %57 = vmatpush1.msra.mxu0 0.0
    %58 = vmatprep.subr.mxu0 0.0
    %59 = vmatpush1.msra.mxu0 0.0
    %60 = vmatprep.subr.mxu0 0.0
    %61 = vmatpush1.msra.mxu0 0.0
    %62 = vmatprep.subr.mxu0 0.0
    %63 = vmatpush1.msra.mxu0 0.0
    %64 = vmatprep.subr.mxu0 0.0
    %65 = vmatpush1.msra.mxu0 0.0
    %66 = vmatprep.subr.mxu0 0.0
    %67 = vmatpush1.msra.mxu0 0.0
    %68 = vmatprep.subr.mxu0 0.0
    %69 = vmatpush1.msra.mxu0 0.0
    %70 = vmatprep.subr.mxu0 0.0
    %71 = vmatpush1.msra.mxu0 0.0
    %72 = vmatprep.subr.mxu0 0.0
    %73 = vmatpush1.msra.mxu0 0.0
    %74 = vmatprep.subr.mxu0 0.0
    %75 = vmatpush1.msra.mxu0 0.0
    %76 = vmatprep.subr.mxu0 0.0
    %77 = vmatpush1.msra.mxu0 0.0
    %78 = vmatprep.subr.mxu0 0.0
    %79 = vmatpush1.msra.mxu0 0.0
    %80 = vmatprep.subr.mxu0 0.0
    %81 = vmatpush1.msra.mxu0 0.0
    %82 = vmatprep.subr.mxu0 0.0
    %83 = vmatpush1.msra.mxu0 0.0
    %84 = vmatprep.subr.mxu0 0.0
    %85 = vmatpush1.msra.mxu0 0.0
    %86 = vmatprep.subr.mxu0 0.0
    %87 = vmatpush1.msra.mxu0 0.0
    %88 = vmatprep.subr.mxu0 0.0
    %89 = vmatpush1.msra.mxu0 0.0
    %90 = vmatprep.subr.mxu0 0.0
    %91 = vmatpush1.msra.mxu0 0.0
    %92 = vmatprep.subr.mxu0 0.0
    %93 = vmatpush1.msra.mxu0 0.0
    %94 = vmatprep.subr.mxu0 0.0
    %95 = vmatpush1.msra.mxu0 0.0
    %96 = vmatprep.subr.mxu0 0.0
    %97 = vmatpush1.msra.mxu0 0.0
    %98 = vmatprep.subr.mxu0 0.0
    %99 = vmatpush1.msra.mxu0 0.0
    %100 = vmatprep.subr.mxu0 0.0
    %101 = vmatpush1.msra.mxu0 0.0
    %102 = vmatprep.subr.mxu0 0.0
    %103 = vmatpush1.msra.mxu0 0.0
    %104 = vmatprep.subr.mxu0 0.0
    %105 = vmatpush1.msra.mxu0 0.0
    %106 = vmatprep.mubr.f32.mxu0 0.0
    %107 = vmatmul.mubr.f32.gmra.mrb[0].mxu0 %v40
    %v108 = vpop.f32.mrb[0].mxu0
    %v109 = vadd.f32 0.0, %v108
    %v110 = vpop.f32.mrb[0].mxu0
    %111 = vdwg.mxu0
    %v112 = vld [vmem:[%s2] sm:$0x1]
    %v114 = vlaneseq
    %v115 = vshrl.u32 %v114, 7
    %v116 = vsub.s32 0, %v115
    %v117 = vrot.slane %v112, %v116
    %v119 = vmul.f32 %v109, %v117
    %v120 = vld [vmem:[%s3] sm:$0x1]
    %v122 = vlaneseq
    %v123 = vshrl.u32 %v122, 7
    %v124 = vsub.s32 0, %v123
    %v125 = vrot.slane %v120, %v124
    %v127 = vadd.f32 %v119, %v125
    %v128 = vmax.f32 %v127, 0.0
    %v129 = vld [vmem:[%s4] sm:$0xff]
    %v130 = vld [vmem:[%s4 + $0x8] sm:$0xff]
    %v131 = vld [vmem:[%s4 + $0x10] sm:$0xff]
    %v132 = vld [vmem:[%s4 + $0x18] sm:$0xff]
    %v133 = vld [vmem:[%s4 + $0x20] sm:$0xff]
    %v134 = vld [vmem:[%s4 + $0x28] sm:$0xff]
    %v135 = vld [vmem:[%s4 + $0x30] sm:$0xff]
    %v136 = vld [vmem:[%s4 + $0x38] sm:$0xff]
    %v137 = vld [vmem:[%s4 + $0x40] sm:$0xff]
    %v138 = vld [vmem:[%s4 + $0x48] sm:$0xff]
    %v139 = vld [vmem:[%s4 + $0x50] sm:$0xff]
    %v140 = vld [vmem:[%s4 + $0x58] sm:$0xff]
    %v141 = vld [vmem:[%s4 + $0x60] sm:$0xff]
    %v142 = vld [vmem:[%s4 + $0x68] sm:$0xff]
    %v143 = vld [vmem:[%s4 + $0x70] sm:$0xff]
    %v144 = vld [vmem:[%s4 + $0x78] sm:$0xff]
    %145 = vmatprep.subr.mxu0 0.0
    %146 = vmatpush1.msra.mxu0 %v129
    %147 = vmatprep.subr.mxu0 0.0
    %148 = vmatpush1.msra.mxu0 %v130
    %149 = vmatprep.subr.mxu0 0.0
    %150 = vmatpush1.msra.mxu0 %v131
    %151 = vmatprep.subr.mxu0 0.0
    %152 = vmatpush1.msra.mxu0 %v132
    %153 = vmatprep.subr.mxu0 0.0
    %154 = vmatpush1.msra.mxu0 %v133
    %155 = vmatprep.subr.mxu0 0.0
    %156 = vmatpush1.msra.mxu0 %v134
    %157 = vmatprep.subr.mxu0 0.0
    %158 = vmatpush1.msra.mxu0 %v135
    %159 = vmatprep.subr.mxu0 0.0
    %160 = vmatpush1.msra.mxu0 %v136
    %161 = vmatprep.subr.mxu0 0.0
    %162 = vmatpush1.msra.mxu0 %v137
    %163 = vmatprep.subr.mxu0 0.0
    %164 = vmatpush1.msra.mxu0 %v138
    %165 = vmatprep.subr.mxu0 0.0
    %166 = vmatpush1.msra.mxu0 %v139
    %167 = vmatprep.subr.mxu0 0.0
    %168 = vmatpush1.msra.mxu0 %v140
    %169 = vmatprep.subr.mxu0 0.0
    %170 = vmatpush1.msra.mxu0 %v141
    %171 = vmatprep.subr.mxu0 0.0
    %172 = vmatpush1.msra.mxu0 %v142
    %173 = vmatprep.subr.mxu0 0.0
    %174 = vmatpush1.msra.mxu0 %v143
    %175 = vmatprep.subr.mxu0 0.0
    %176 = vmatpush1.msra.mxu0 %v144
    %177 = vmatprep.subr.mxu0 0.0
    %178 = vmatpush1.msra.mxu0 0.0
    %179 = vmatprep.subr.mxu0 0.0
    %180 = vmatpush1.msra.mxu0 0.0
    %181 = vmatprep.subr.mxu0 0.0
    %182 = vmatpush1.msra.mxu0 0.0
    %183 = vmatprep.subr.mxu0 0.0
    %184 = vmatpush1.msra.mxu0 0.0
    %185 = vmatprep.subr.mxu0 0.0
    %186 = vmatpush1.msra.mxu0 0.0
    %187 = vmatprep.subr.mxu0 0.0
    %188 = vmatpush1.msra.mxu0 0.0
    %189 = vmatprep.subr.mxu0 0.0
    %190 = vmatpush1.msra.mxu0 0.0
    %191 = vmatprep.subr.mxu0 0.0
    %192 = vmatpush1.msra.mxu0 0.0
    %193 = vmatprep.subr.mxu0 0.0
    %194 = vmatpush1.msra.mxu0 0.0
    %195 = vmatprep.subr.mxu0 0.0
    %196 = vmatpush1.msra.mxu0 0.0
    %197 = vmatprep.subr.mxu0 0.0
    %198 = vmatpush1.msra.mxu0 0.0
    %199 = vmatprep.subr.mxu0 0.0
    %200 = vmatpush1.msra.mxu0 0.0
    %201 = vmatprep.subr.mxu0 0.0
    %202 = vmatpush1.msra.mxu0 0.0
    %203 = vmatprep.subr.mxu0 0.0
    %204 = vmatpush1.msra.mxu0 0.0
    %205 = vmatprep.subr.mxu0 0.0
    %206 = vmatpush1.msra.mxu0 0.0
    %207 = vmatprep.subr.mxu0 0.0
    %208 = vmatpush1.msra.mxu0 0.0
    %209 = vmatprep.mubr.f32.mxu0 0.0
    %210 = vmatmul.mubr.f32.gmra.mrb[0].mxu0 %v128
    %v211 = vpop.f32.mrb[0].mxu0
    %v212 = vadd.f32 0.0, %v211
    %v213 = vpop.f32.mrb[0].mxu0
    %214 = vdwg.mxu0
    %v215 = vld [vmem:[%s5] sm:$0x1]
    %v217 = vlaneseq
    %v218 = vshrl.u32 %v217, 7
    %v219 = vsub.s32 0, %v218
    %v220 = vrot.slane %v215, %v219
    %v222 = vmul.f32 %v212, %v220
    %v223 = vld [vmem:[%s6] sm:$0x1]
    %v225 = vlaneseq
    %v226 = vshrl.u32 %v225, 7
    %v227 = vsub.s32 0, %v226
    %v228 = vrot.slane %v223, %v227
    %v230 = vadd.f32 %v222, %v228
    %v231 = vmax.f32 %v230, 0.0
    %v232 = vld [vmem:[%s7] sm:$0x3]
    %vm233 = vcmask 25600
    %v234 = vsel %vm233, %v232, -inf
    %235 = vmax.xlane.f32.xlu0 %v234
    %v236 = vpop.xlane.xlu0 %235
    %v237 = vsub.f32 %v232, %v236
    %v238 = vmul.f32 %v237, 1.442695
    %v239 = vpow.pop %v238
    %v240 = vsel %vm233, %v239, 0.0
    %241 = vadd.xlane.f32.xlu0 %v240
    %v242 = vpop.xlane.xlu0 %241
    %v243 = vrcp.pop %v242
    %v244 = vmul.f32 %v239, %v243
    %245 = vst.msk [vmem:[#allocation4] sm:$0x3] %vm233, %v244
    %s247 = vtos %v244
    %v248 = vstv %s247
    %v250 = vmul.f32 %v248, %v231
    %v251 = vadd.f32 %v250, 0.0
    %252 = vrot.lane.b32.xlu0 %v244, 127
    %v253 = vpop.permute.xlu0 %252
    %s254 = vtos %v253
    %v255 = vstv %s254
    %v257 = vmul.f32 %v255, %v231
    %259 = vrot.lane.b32.xlu0 %v257, 112
    %v260 = vpop.permute.xlu0 %259
    %v262 = vadd.f32 %v251, %v260
    %263 = vrot.lane.b32.xlu0 %v244, 126
    %v264 = vpop.permute.xlu0 %263
    %s265 = vtos %v264
    %v266 = vstv %s265
    %v268 = vmul.f32 %v266, %v231
    %270 = vrot.lane.b32.xlu0 %v268, 96
    %v271 = vpop.permute.xlu0 %270
    %v273 = vadd.f32 %v262, %v271
    %274 = vrot.lane.b32.xlu0 %v244, 125
    %v275 = vpop.permute.xlu0 %274
    %s276 = vtos %v275
    %v277 = vstv %s276
    %v279 = vmul.f32 %v277, %v231
    %281 = vrot.lane.b32.xlu0 %v279, 80
    %v282 = vpop.permute.xlu0 %281
    %v284 = vadd.f32 %v273, %v282
    %vm285 = vcmask 130048
    %286 = vst.msk [vmem:[#allocation2] sm:$0xff] %vm285, %v284
    %v287 = vrot.slane %v244, 1
    %s288 = vtos %v287
    %v289 = vstv %s288
    %v291 = vmul.f32 %v289, %v231
    %v292 = vadd.f32 %v291, 0.0
    %293 = vrot.lane.b32.xlu0 %v287, 127
    %v294 = vpop.permute.xlu0 %293
    %s295 = vtos %v294
    %v296 = vstv %s295
    %v298 = vmul.f32 %v296, %v231
    %300 = vrot.lane.b32.xlu0 %v298, 112
    %v301 = vpop.permute.xlu0 %300
    %v303 = vadd.f32 %v292, %v301
    %304 = vrot.lane.b32.xlu0 %v287, 126
    %v305 = vpop.permute.xlu0 %304
    %s306 = vtos %v305
    %v307 = vstv %s306
    %v309 = vmul.f32 %v307, %v231
    %311 = vrot.lane.b32.xlu0 %v309, 96
    %v312 = vpop.permute.xlu0 %311
    %v314 = vadd.f32 %v303, %v312
    %315 = vrot.lane.b32.xlu0 %v287, 125
    %v316 = vpop.permute.xlu0 %315
    %s317 = vtos %v316
    %v318 = vstv %s317
    %v320 = vmul.f32 %v318, %v231
    %322 = vrot.lane.b32.xlu0 %v320, 80
    %v323 = vpop.permute.xlu0 %322
    %v325 = vadd.f32 %v314, %v323
    %s326 = scalar_lea.vmem [#allocation2], 8
    %327 = vst.msk [vmem:[%s326] sm:$0xff] %vm285, %v325
    // Predicated region
    $region34: #{tpu_custom_call.1} parent=1 // pred_check
      _
    $region35: #{tpu_custom_call.1} parent=1 // pred_check_branch
      %329 = sbr.rel (0) target = $region37
    $region36: #{tpu_custom_call.1} parent=1 // pred_region
      %s331 = ssub.s32 256, 256
      %332 = vsyncadd [#allocation3], %s331
      %s333 = sshll.u32 [#allocation2], 4
      %s334 = int_to_ptr.vmem [resolvable:$true] %s333
      %339 = dma.vmem_to_hbm [thread:$0]  %s334, 256, %s8, [#allocation3], 128, 128, 8
    $region37: #{tpu_custom_call.1} parent=1 // pred_fallthru
      _
    // Predicated region
    $region38: #{tpu_custom_call.1} parent=1 // pred_check
      _
    $region39: #{tpu_custom_call.1} parent=1 // pred_check_branch
      %341 = sbr.rel (0) target = $region41
    $region40: #{tpu_custom_call.1} parent=1 // pred_region
      %s343 = ssub.s32 32, 32
      %344 = vsyncadd [#allocation5], %s343
      %s346 = sshll.u32 [#allocation4], 4
      %s347 = int_to_ptr.vmem [resolvable:$true] %s346
      %349 = dma.vmem_to_hbm [thread:$0]  %s347, 32, %s9, [#allocation5]
    $region41: #{tpu_custom_call.1} parent=1 // pred_fallthru
      _
    // Predicated region
    $region42: #{tpu_custom_call.1} parent=1 // pred_check
      _
    $region43: #{tpu_custom_call.1} parent=1 // pred_check_branch
      %351 = sbr.rel (0) target = $region45
    $region44: #{tpu_custom_call.1} parent=1 // pred_region
      %352 = dma.done [#allocation3], 256
    $region45: #{tpu_custom_call.1} parent=1 // pred_fallthru
      _
    // Predicated region
    $region46: #{tpu_custom_call.1} parent=1 // pred_check
      _
    $region47: #{tpu_custom_call.1} parent=1 // pred_check_branch
      %354 = sbr.rel (0) target = $region49
    $region48: #{tpu_custom_call.1} parent=1 // pred_region
      %355 = dma.done [#allocation5], 32
    $region49: #{tpu_custom_call.1} parent=1 // pred_fallthru
      _
    %356 = vsyncpa [#allocation3], 1
    %357 = vsyncpa [#allocation5], 1

</llo_original>
